<compile_context>
chip_gen: v6e
topology: v6e:2x2x1
jax: 0.10.0
libtpu: 0.0.40
codegen_flags: <defaults>
</compile_context>

<pallas_src>
import math

import jax
import jax.numpy as jnp
from jax.experimental import pallas as pl
from jax.experimental.pallas import tpu as pltpu


def _relu_kernel(x_ref, o_ref):
    # Elementwise max with 0 on the VPU (weak-typed 0 keeps the input dtype).
    o_ref[...] = jnp.maximum(x_ref[...], 0)


def relu_pallas(x: jax.Array) -> jax.Array:
    """ReLU(x): same shape/dtype semantics as torch.nn.ReLU (out-of-place)."""
    orig_shape = x.shape
    dtype = x.dtype

    # --- Free 2D view: merge leading dims into rows, last two dims into lanes.
    if x.ndim >= 3:
        rows = math.prod(orig_shape[:-2])
        cols = orig_shape[-2] * orig_shape[-1]
    elif x.ndim == 2:
        rows, cols = orig_shape
    else:
        rows, cols = 1, max(1, math.prod(orig_shape))
    x2d = x.reshape(rows, cols)

    itemsize = jnp.dtype(dtype).itemsize
    total_bytes = rows * cols * itemsize

    # --- Tiling: single block for small slabs; coarse row tiles for big ones.
    # 4 MiB per block keeps in+out (double-buffered) well under the 32 MiB
    # default scoped VMEM on v6e/v7x (64 MiB physical on v7x).
    max_block_bytes = 4 * 1024 * 1024
    if total_bytes <= max_block_bytes:
        # Single-block launch; latency-bound at this size, so one TC is fine.
        tile_rows = rows
        num_blocks = 1
    else:
        # Dtype-aware sublane packing: f32 -> 8 rows, bf16 -> 16, 8-bit -> 32.
        sub = {4: 8, 2: 16, 1: 32}.get(itemsize, 8)
        tile_rows = max(sub, (max_block_bytes // max(1, cols * itemsize)) // sub * sub)
        tile_rows = min(tile_rows, rows)
        num_blocks = pl.cdiv(rows, tile_rows)  # ragged last block handled by Pallas

    out2d = pl.pallas_call(
        _relu_kernel,
        out_shape=jax.ShapeDtypeStruct((rows, cols), dtype),
        grid=(num_blocks,),
        in_specs=[pl.BlockSpec((tile_rows, cols), lambda i: (i, 0))],
        out_specs=pl.BlockSpec((tile_rows, cols), lambda i: (i, 0)),
        compiler_params=pltpu.CompilerParams(
            dimension_semantics=("parallel",),
        ),
        cost_estimate=pl.CostEstimate(
            flops=rows * cols,
            transcendentals=0,
            bytes_accessed=2 * total_bytes,
        ),
    )(x2d)

    return out2d.reshape(orig_shape)


if __name__ == "__main__":
    # Shape implied by the module's forward: x413 ~ [1, 888, 14, 14]
    key = jax.random.PRNGKey(0)
    x = jax.random.normal(key, (1, 888, 14, 14), dtype=jnp.float32)

    y = jax.block_until_ready(relu_pallas(x))

    # Sanity check against the pure-JAX reference.
    ref = jnp.maximum(x, 0.0)
    assert y.shape == x.shape and y.dtype == x.dtype
    assert bool(jnp.allclose(y, ref)), "mismatch vs reference ReLU"

    print("KERNEL_OK")
</pallas_src>

<mosaic_0001>
module attributes {stable_mosaic.version = 11 : i64} {
  func.func @_relu_kernel(%arg0: i32, %arg1: memref<888x196xf32, #tpu.memory_space<vmem>>, %arg2: memref<888x196xf32, #tpu.memory_space<vmem>>) attributes {dimension_semantics = [#tpu.dimension_semantics<parallel>], iteration_bounds = array<i64: 1>, scalar_prefetch = 0 : i64, scratch_operands = 0 : i64, tpu.core_type = #tpu.core_type<tc>, window_params = [{transform_indices = @transform_0, window_bounds = array<i64: 888, 196>}, {transform_indices = @transform_1, window_bounds = array<i64: 888, 196>}]} {
    %c0 = arith.constant 0 : index
    %c0_0 = arith.constant 0 : index
    %0 = vector.load %arg1[%c0, %c0_0] : memref<888x196xf32, #tpu.memory_space<vmem>>, vector<888x196xf32>
    %cst = arith.constant 0.000000e+00 : f32
    %1 = vector.broadcast %cst : f32 to vector<888x196xf32>
    %2 = arith.maximumf %0, %1 : vector<888x196xf32>
    %c0_1 = arith.constant 0 : index
    %c0_2 = arith.constant 0 : index
    %3 = vector.load %arg2[%c0_1, %c0_2] : memref<888x196xf32, #tpu.memory_space<vmem>>, vector<888x196xf32>
    tpu.vector_store %arg2[%c0_1, %c0_2], %2 {strides = array<i32>} : memref<888x196xf32, #tpu.memory_space<vmem>>, vector<888x196xf32>,
    return
  }
  func.func @transform_0(%arg0: i32) -> (i32, i32) {
    %c0_i32 = arith.constant 0 : i32
    %c0_i32_0 = arith.constant 0 : i32
    return %arg0, %c0_i32 : i32, i32
  }
  func.func @transform_1(%arg0: i32) -> (i32, i32) {
    %c0_i32 = arith.constant 0 : i32
    %c0_i32_0 = arith.constant 0 : i32
    return %arg0, %c0_i32 : i32, i32
  }
}

</mosaic_0001>

<llo_original>
// kernel: tpu_custom_call.1
$region0: #{tpu_custom_call.1}
  #allocation0 [shape = 'u32[]', space=smem, size = 0x4, offset = 0x4, fixed_abs, tag = 'smem constant byte address 0x4 - core index']
  #allocation1 [shape = 'u32[144,128]{1,0:T(1,128)}', space=vmem, size = 0x12000, scoped, tag = 'internal scratch']
  %s0 = inlined_call_operand.vmem [shape: f32[888,196], index: 0, kind: input, shape index: {}]
  %s1 = inlined_call_operand.vmem [shape: f32[888,196], index: 1, kind: output, shape index: {}]
  %s2 = sld [smem:[#allocation0]]
  $region14: #{tpu_custom_call.1} parent=0
    _
  %s4 = ssub.s32 1, %s2
  %s5 = scalar_select 0, %s4, %s2
  // Predicated region
  $region2: #{tpu_custom_call.1} parent=0 // pred_check
    _
  $region3: #{tpu_custom_call.1} parent=0 // pred_check_branch
    %7 = sbr.rel (0) target = $region5
  $region4: #{tpu_custom_call.1} parent=0 // pred_region
    _
  $region5: #{tpu_custom_call.1} parent=0 // pred_fallthru
    _
  %v8 = vld [vmem:[%s0] sm:$0xff]
  %v9 = vld [vmem:[%s0 + $0x8] sm:$0xff]
  %v10 = vld [vmem:[%s0 + $0x10] sm:$0xff]
  %v11 = vld [vmem:[%s0 + $0x18] sm:$0xff]
  %v12 = vld [vmem:[%s0 + $0x20] sm:$0xff]
  %v13 = vld [vmem:[%s0 + $0x28] sm:$0xff]
  %v14 = vld [vmem:[%s0 + $0x30] sm:$0xff]
  %v15 = vld [vmem:[%s0 + $0x38] sm:$0xff]
  %v16 = vld [vmem:[%s0 + $0x40] sm:$0xff]
  %v17 = vld [vmem:[%s0 + $0x48] sm:$0xff]
  %v18 = vld [vmem:[%s0 + $0x50] sm:$0xff]
  %v19 = vld [vmem:[%s0 + $0x58] sm:$0xff]
  %v20 = vld [vmem:[%s0 + $0x60] sm:$0xff]
  %v21 = vld [vmem:[%s0 + $0x68] sm:$0xff]
  %v22 = vld [vmem:[%s0 + $0x70] sm:$0xff]
  %v23 = vld [vmem:[%s0 + $0x78] sm:$0xff]
  %v24 = vld [vmem:[%s0 + $0x80] sm:$0xff]
  %v25 = vld [vmem:[%s0 + $0x88] sm:$0xff]
  %v26 = vld [vmem:[%s0 + $0x90] sm:$0xff]
  %v27 = vld [vmem:[%s0 + $0x98] sm:$0xff]
  %v28 = vld [vmem:[%s0 + $0xa0] sm:$0xff]
  %v29 = vld [vmem:[%s0 + $0xa8] sm:$0xff]
  %v30 = vld [vmem:[%s0 + $0xb0] sm:$0xff]
  %v31 = vld [vmem:[%s0 + $0xb8] sm:$0xff]
  %v32 = vld [vmem:[%s0 + $0xc0] sm:$0xff]
  %v33 = vld [vmem:[%s0 + $0xc8] sm:$0xff]
  %v34 = vld [vmem:[%s0 + $0xd0] sm:$0xff]
  %v35 = vld [vmem:[%s0 + $0xd8] sm:$0xff]
  %v36 = vld [vmem:[%s0 + $0xe0] sm:$0xff]
  %v37 = vld [vmem:[%s0 + $0xe8] sm:$0xff]
  %v38 = vld [vmem:[%s0 + $0xf0] sm:$0xff]
  %v39 = vld [vmem:[%s0 + $0xf8] sm:$0xff]
  %v40 = vld [vmem:[%s0 + $0x100] sm:$0xff]
  %v41 = vld [vmem:[%s0 + $0x108] sm:$0xff]
  %v42 = vld [vmem:[%s0 + $0x110] sm:$0xff]
  %v43 = vld [vmem:[%s0 + $0x118] sm:$0xff]
  %v44 = vld [vmem:[%s0 + $0x120] sm:$0xff]
  %v45 = vld [vmem:[%s0 + $0x128] sm:$0xff]
  %v46 = vld [vmem:[%s0 + $0x130] sm:$0xff]
  %v47 = vld [vmem:[%s0 + $0x138] sm:$0xff]
  %v48 = vld [vmem:[%s0 + $0x140] sm:$0xff]
  %v49 = vld [vmem:[%s0 + $0x148] sm:$0xff]
  %v50 = vld [vmem:[%s0 + $0x150] sm:$0xff]
  %v51 = vld [vmem:[%s0 + $0x158] sm:$0xff]
  %v52 = vld [vmem:[%s0 + $0x160] sm:$0xff]
  %v53 = vld [vmem:[%s0 + $0x168] sm:$0xff]
  %v54 = vld [vmem:[%s0 + $0x170] sm:$0xff]
  %v55 = vld [vmem:[%s0 + $0x178] sm:$0xff]
  %v56 = vld [vmem:[%s0 + $0x180] sm:$0xff]
  %v57 = vld [vmem:[%s0 + $0x188] sm:$0xff]
  %v58 = vld [vmem:[%s0 + $0x190] sm:$0xff]
  %v59 = vld [vmem:[%s0 + $0x198] sm:$0xff]
  %v60 = vld [vmem:[%s0 + $0x1a0] sm:$0xff]
  %v61 = vld [vmem:[%s0 + $0x1a8] sm:$0xff]
  %v62 = vld [vmem:[%s0 + $0x1b0] sm:$0xff]
  %v63 = vld [vmem:[%s0 + $0x1b8] sm:$0xff]
  %v64 = vld [vmem:[%s0 + $0x1c0] sm:$0xff]
  %v65 = vld [vmem:[%s0 + $0x1c8] sm:$0xff]
  %v66 = vld [vmem:[%s0 + $0x1d0] sm:$0xff]
  %v67 = vld [vmem:[%s0 + $0x1d8] sm:$0xff]
  %v68 = vld [vmem:[%s0 + $0x1e0] sm:$0xff]
  %v69 = vld [vmem:[%s0 + $0x1e8] sm:$0xff]
  %v70 = vld [vmem:[%s0 + $0x1f0] sm:$0xff]
  %v71 = vld [vmem:[%s0 + $0x1f8] sm:$0xff]
  %v72 = vld [vmem:[%s0 + $0x200] sm:$0xff]
  %v73 = vld [vmem:[%s0 + $0x208] sm:$0xff]
  %v74 = vld [vmem:[%s0 + $0x210] sm:$0xff]
  %v75 = vld [vmem:[%s0 + $0x218] sm:$0xff]
  %v76 = vld [vmem:[%s0 + $0x220] sm:$0xff]
  %v77 = vld [vmem:[%s0 + $0x228] sm:$0xff]
  %v78 = vld [vmem:[%s0 + $0x230] sm:$0xff]
  %v79 = vld [vmem:[%s0 + $0x238] sm:$0xff]
  %v80 = vld [vmem:[%s0 + $0x240] sm:$0xff]
  %v81 = vld [vmem:[%s0 + $0x248] sm:$0xff]
  %v82 = vld [vmem:[%s0 + $0x250] sm:$0xff]
  %v83 = vld [vmem:[%s0 + $0x258] sm:$0xff]
  %v84 = vld [vmem:[%s0 + $0x260] sm:$0xff]
  %v85 = vld [vmem:[%s0 + $0x268] sm:$0xff]
  %v86 = vld [vmem:[%s0 + $0x270] sm:$0xff]
  %v87 = vld [vmem:[%s0 + $0x278] sm:$0xff]
  %v88 = vld [vmem:[%s0 + $0x280] sm:$0xff]
  %v89 = vld [vmem:[%s0 + $0x288] sm:$0xff]
  %v90 = vld [vmem:[%s0 + $0x290] sm:$0xff]
  %v91 = vld [vmem:[%s0 + $0x298] sm:$0xff]
  %v92 = vld [vmem:[%s0 + $0x2a0] sm:$0xff]
  %v93 = vld [vmem:[%s0 + $0x2a8] sm:$0xff]
  %v94 = vld [vmem:[%s0 + $0x2b0] sm:$0xff]
  %v95 = vld [vmem:[%s0 + $0x2b8] sm:$0xff]
  %v96 = vld [vmem:[%s0 + $0x2c0] sm:$0xff]
  %v97 = vld [vmem:[%s0 + $0x2c8] sm:$0xff]
  %v98 = vld [vmem:[%s0 + $0x2d0] sm:$0xff]
  %v99 = vld [vmem:[%s0 + $0x2d8] sm:$0xff]
  %v100 = vld [vmem:[%s0 + $0x2e0] sm:$0xff]
  %v101 = vld [vmem:[%s0 + $0x2e8] sm:$0xff]
  %v102 = vld [vmem:[%s0 + $0x2f0] sm:$0xff]
  %v103 = vld [vmem:[%s0 + $0x2f8] sm:$0xff]
  %v104 = vld [vmem:[%s0 + $0x300] sm:$0xff]
  %v105 = vld [vmem:[%s0 + $0x308] sm:$0xff]
  %v106 = vld [vmem:[%s0 + $0x310] sm:$0xff]
  %v107 = vld [vmem:[%s0 + $0x318] sm:$0xff]
  %v108 = vld [vmem:[%s0 + $0x320] sm:$0xff]
  %v109 = vld [vmem:[%s0 + $0x328] sm:$0xff]
  %v110 = vld [vmem:[%s0 + $0x330] sm:$0xff]
  %v111 = vld [vmem:[%s0 + $0x338] sm:$0xff]
  %v112 = vld [vmem:[%s0 + $0x340] sm:$0xff]
  %v113 = vld [vmem:[%s0 + $0x348] sm:$0xff]
  %v114 = vld [vmem:[%s0 + $0x350] sm:$0xff]
  %v115 = vld [vmem:[%s0 + $0x358] sm:$0xff]
  %v116 = vld [vmem:[%s0 + $0x360] sm:$0xff]
  %v117 = vld [vmem:[%s0 + $0x368] sm:$0xff]
  %v118 = vld [vmem:[%s0 + $0x370] sm:$0xff]
  %v119 = vld [vmem:[%s0 + $0x378] sm:$0xff]
  %v120 = vld [vmem:[%s0 + $0x380] sm:$0xff]
  %v121 = vld [vmem:[%s0 + $0x388] sm:$0xff]
  %v122 = vld [vmem:[%s0 + $0x390] sm:$0xff]
  %v123 = vld [vmem:[%s0 + $0x398] sm:$0xff]
  %v124 = vld [vmem:[%s0 + $0x3a0] sm:$0xff]
  %v125 = vld [vmem:[%s0 + $0x3a8] sm:$0xff]
  %v126 = vld [vmem:[%s0 + $0x3b0] sm:$0xff]
  %v127 = vld [vmem:[%s0 + $0x3b8] sm:$0xff]
  %v128 = vld [vmem:[%s0 + $0x3c0] sm:$0xff]
  %v129 = vld [vmem:[%s0 + $0x3c8] sm:$0xff]
  %v130 = vld [vmem:[%s0 + $0x3d0] sm:$0xff]
  %v131 = vld [vmem:[%s0 + $0x3d8] sm:$0xff]
  %v132 = vld [vmem:[%s0 + $0x3e0] sm:$0xff]
  %v133 = vld [vmem:[%s0 + $0x3e8] sm:$0xff]
  %v134 = vld [vmem:[%s0 + $0x3f0] sm:$0xff]
  %v135 = vld [vmem:[%s0 + $0x3f8] sm:$0xff]
  %v136 = vld [vmem:[%s0 + $0x400] sm:$0xff]
  %v137 = vld [vmem:[%s0 + $0x408] sm:$0xff]
  %v138 = vld [vmem:[%s0 + $0x410] sm:$0xff]
  %v139 = vld [vmem:[%s0 + $0x418] sm:$0xff]
  %v140 = vld [vmem:[%s0 + $0x420] sm:$0xff]
  %v141 = vld [vmem:[%s0 + $0x428] sm:$0xff]
  %v142 = vld [vmem:[%s0 + $0x430] sm:$0xff]
  %v143 = vld [vmem:[%s0 + $0x438] sm:$0xff]
  %v144 = vld [vmem:[%s0 + $0x440] sm:$0xff]
  %v145 = vld [vmem:[%s0 + $0x448] sm:$0xff]
  %v146 = vld [vmem:[%s0 + $0x450] sm:$0xff]
  %v147 = vld [vmem:[%s0 + $0x458] sm:$0xff]
  %v148 = vld [vmem:[%s0 + $0x460] sm:$0xff]
  %v149 = vld [vmem:[%s0 + $0x468] sm:$0xff]
  %v150 = vld [vmem:[%s0 + $0x470] sm:$0xff]
  %v151 = vld [vmem:[%s0 + $0x478] sm:$0xff]
  %v152 = vld [vmem:[%s0 + $0x480] sm:$0xff]
  %v153 = vld [vmem:[%s0 + $0x488] sm:$0xff]
  %v154 = vld [vmem:[%s0 + $0x490] sm:$0xff]
  %v155 = vld [vmem:[%s0 + $0x498] sm:$0xff]
  %v156 = vld [vmem:[%s0 + $0x4a0] sm:$0xff]
  %v157 = vld [vmem:[%s0 + $0x4a8] sm:$0xff]
  %v158 = vld [vmem:[%s0 + $0x4b0] sm:$0xff]
  %v159 = vld [vmem:[%s0 + $0x4b8] sm:$0xff]
  %v160 = vld [vmem:[%s0 + $0x4c0] sm:$0xff]
  %v161 = vld [vmem:[%s0 + $0x4c8] sm:$0xff]
  %v162 = vld [vmem:[%s0 + $0x4d0] sm:$0xff]
  %v163 = vld [vmem:[%s0 + $0x4d8] sm:$0xff]
  %v164 = vld [vmem:[%s0 + $0x4e0] sm:$0xff]
  %v165 = vld [vmem:[%s0 + $0x4e8] sm:$0xff]
  %v166 = vld [vmem:[%s0 + $0x4f0] sm:$0xff]
  %v167 = vld [vmem:[%s0 + $0x4f8] sm:$0xff]
  %v168 = vld [vmem:[%s0 + $0x500] sm:$0xff]
  %v169 = vld [vmem:[%s0 + $0x508] sm:$0xff]
  %v170 = vld [vmem:[%s0 + $0x510] sm:$0xff]
  %v171 = vld [vmem:[%s0 + $0x518] sm:$0xff]
  %v172 = vld [vmem:[%s0 + $0x520] sm:$0xff]
  %v173 = vld [vmem:[%s0 + $0x528] sm:$0xff]
  %v174 = vld [vmem:[%s0 + $0x530] sm:$0xff]
  %v175 = vld [vmem:[%s0 + $0x538] sm:$0xff]
  %v176 = vld [vmem:[%s0 + $0x540] sm:$0xff]
  %v177 = vld [vmem:[%s0 + $0x548] sm:$0xff]
  %v178 = vld [vmem:[%s0 + $0x550] sm:$0xff]
  %v179 = vld [vmem:[%s0 + $0x558] sm:$0xff]
  %v180 = vld [vmem:[%s0 + $0x560] sm:$0xff]
  %v181 = vld [vmem:[%s0 + $0x568] sm:$0xff]
  %v182 = vld [vmem:[%s0 + $0x570] sm:$0xff]
  %v183 = vld [vmem:[%s0 + $0x578] sm:$0xff]
  %v184 = vld [vmem:[%s0 + $0x580] sm:$0xff]
  %v185 = vld [vmem:[%s0 + $0x588] sm:$0xff]
  %v186 = vld [vmem:[%s0 + $0x590] sm:$0xff]
  %v187 = vld [vmem:[%s0 + $0x598] sm:$0xff]
  %v188 = vld [vmem:[%s0 + $0x5a0] sm:$0xff]
  %v189 = vld [vmem:[%s0 + $0x5a8] sm:$0xff]
  %v190 = vld [vmem:[%s0 + $0x5b0] sm:$0xff]
  %v191 = vld [vmem:[%s0 + $0x5b8] sm:$0xff]
  %v192 = vld [vmem:[%s0 + $0x5c0] sm:$0xff]
  %v193 = vld [vmem:[%s0 + $0x5c8] sm:$0xff]
  %v194 = vld [vmem:[%s0 + $0x5d0] sm:$0xff]
  %v195 = vld [vmem:[%s0 + $0x5d8] sm:$0xff]
  %v196 = vld [vmem:[%s0 + $0x5e0] sm:$0xff]
  %v197 = vld [vmem:[%s0 + $0x5e8] sm:$0xff]
  %v198 = vld [vmem:[%s0 + $0x5f0] sm:$0xff]
  %v199 = vld [vmem:[%s0 + $0x5f8] sm:$0xff]
  %v200 = vld [vmem:[%s0 + $0x600] sm:$0xff]
  %v201 = vld [vmem:[%s0 + $0x608] sm:$0xff]
  %v202 = vld [vmem:[%s0 + $0x610] sm:$0xff]
  %v203 = vld [vmem:[%s0 + $0x618] sm:$0xff]
  %v204 = vld [vmem:[%s0 + $0x620] sm:$0xff]
  %v205 = vld [vmem:[%s0 + $0x628] sm:$0xff]
  %v206 = vld [vmem:[%s0 + $0x630] sm:$0xff]
  %v207 = vld [vmem:[%s0 + $0x638] sm:$0xff]
  %v208 = vld [vmem:[%s0 + $0x640] sm:$0xff]
  %v209 = vld [vmem:[%s0 + $0x648] sm:$0xff]
  %v210 = vld [vmem:[%s0 + $0x650] sm:$0xff]
  %v211 = vld [vmem:[%s0 + $0x658] sm:$0xff]
  %v212 = vld [vmem:[%s0 + $0x660] sm:$0xff]
  %v213 = vld [vmem:[%s0 + $0x668] sm:$0xff]
  %v214 = vld [vmem:[%s0 + $0x670] sm:$0xff]
  %v215 = vld [vmem:[%s0 + $0x678] sm:$0xff]
  %v216 = vld [vmem:[%s0 + $0x680] sm:$0xff]
  %v217 = vld [vmem:[%s0 + $0x688] sm:$0xff]
  %v218 = vld [vmem:[%s0 + $0x690] sm:$0xff]
  %v219 = vld [vmem:[%s0 + $0x698] sm:$0xff]
  %v220 = vld [vmem:[%s0 + $0x6a0] sm:$0xff]
  %v221 = vld [vmem:[%s0 + $0x6a8] sm:$0xff]
  %v222 = vld [vmem:[%s0 + $0x6b0] sm:$0xff]
  %v223 = vld [vmem:[%s0 + $0x6b8] sm:$0xff]
  %v224 = vld [vmem:[%s0 + $0x6c0] sm:$0xff]
  %v225 = vld [vmem:[%s0 + $0x6c8] sm:$0xff]
  %v226 = vld [vmem:[%s0 + $0x6d0] sm:$0xff]
  %v227 = vld [vmem:[%s0 + $0x6d8] sm:$0xff]
  %v228 = vld [vmem:[%s0 + $0x6e0] sm:$0xff]
  %v229 = vld [vmem:[%s0 + $0x6e8] sm:$0xff]
  %v230 = vmax.f32 %v8, 0.0
  %v231 = vmax.f32 %v9, 0.0
  %v232 = vmax.f32 %v10, 0.0
  %v233 = vmax.f32 %v11, 0.0
  %v234 = vmax.f32 %v12, 0.0
  %v235 = vmax.f32 %v13, 0.0
  %v236 = vmax.f32 %v14, 0.0
  %v237 = vmax.f32 %v15, 0.0
  %v238 = vmax.f32 %v16, 0.0
  %v239 = vmax.f32 %v17, 0.0
  %v240 = vmax.f32 %v18, 0.0
  %v241 = vmax.f32 %v19, 0.0
  %v242 = vmax.f32 %v20, 0.0
  %v243 = vmax.f32 %v21, 0.0
  %v244 = vmax.f32 %v22, 0.0
  %v245 = vmax.f32 %v23, 0.0
  %v246 = vmax.f32 %v24, 0.0
  %v247 = vmax.f32 %v25, 0.0
  %v248 = vmax.f32 %v26, 0.0
  %v249 = vmax.f32 %v27, 0.0
  %v250 = vmax.f32 %v28, 0.0
  %v251 = vmax.f32 %v29, 0.0
  %v252 = vmax.f32 %v30, 0.0
  %v253 = vmax.f32 %v31, 0.0
  %v254 = vmax.f32 %v32, 0.0
  %v255 = vmax.f32 %v33, 0.0
  %v256 = vmax.f32 %v34, 0.0
  %v257 = vmax.f32 %v35, 0.0
  %v258 = vmax.f32 %v36, 0.0
  %v259 = vmax.f32 %v37, 0.0
  %v260 = vmax.f32 %v38, 0.0
  %v261 = vmax.f32 %v39, 0.0
  %v262 = vmax.f32 %v40, 0.0
  %v263 = vmax.f32 %v41, 0.0
  %v264 = vmax.f32 %v42, 0.0
  %v265 = vmax.f32 %v43, 0.0
  %v266 = vmax.f32 %v44, 0.0
  %v267 = vmax.f32 %v45, 0.0
  %v268 = vmax.f32 %v46, 0.0
  %v269 = vmax.f32 %v47, 0.0
  %v270 = vmax.f32 %v48, 0.0
  %v271 = vmax.f32 %v49, 0.0
  %v272 = vmax.f32 %v50, 0.0
  %v273 = vmax.f32 %v51, 0.0
  %v274 = vmax.f32 %v52, 0.0
  %v275 = vmax.f32 %v53, 0.0
  %v276 = vmax.f32 %v54, 0.0
  %v277 = vmax.f32 %v55, 0.0
  %v278 = vmax.f32 %v56, 0.0
  %v279 = vmax.f32 %v57, 0.0
  %v280 = vmax.f32 %v58, 0.0
  %v281 = vmax.f32 %v59, 0.0
  %v282 = vmax.f32 %v60, 0.0
  %v283 = vmax.f32 %v61, 0.0
  %v284 = vmax.f32 %v62, 0.0
  %v285 = vmax.f32 %v63, 0.0
  %v286 = vmax.f32 %v64, 0.0
  %v287 = vmax.f32 %v65, 0.0
  %v288 = vmax.f32 %v66, 0.0
  %v289 = vmax.f32 %v67, 0.0
  %v290 = vmax.f32 %v68, 0.0
  %v291 = vmax.f32 %v69, 0.0
  %v292 = vmax.f32 %v70, 0.0
  %v293 = vmax.f32 %v71, 0.0
  %v294 = vmax.f32 %v72, 0.0
  %v295 = vmax.f32 %v73, 0.0
  %v296 = vmax.f32 %v74, 0.0
  %v297 = vmax.f32 %v75, 0.0
  %v298 = vmax.f32 %v76, 0.0
  %v299 = vmax.f32 %v77, 0.0
  %v300 = vmax.f32 %v78, 0.0
  %v301 = vmax.f32 %v79, 0.0
  %v302 = vmax.f32 %v80, 0.0
  %v303 = vmax.f32 %v81, 0.0
  %v304 = vmax.f32 %v82, 0.0
  %v305 = vmax.f32 %v83, 0.0
  %v306 = vmax.f32 %v84, 0.0
  %v307 = vmax.f32 %v85, 0.0
  %v308 = vmax.f32 %v86, 0.0
  %v309 = vmax.f32 %v87, 0.0
  %v310 = vmax.f32 %v88, 0.0
  %v311 = vmax.f32 %v89, 0.0
  %v312 = vmax.f32 %v90, 0.0
  %v313 = vmax.f32 %v91, 0.0
  %v314 = vmax.f32 %v92, 0.0
  %v315 = vmax.f32 %v93, 0.0
  %v316 = vmax.f32 %v94, 0.0
  %v317 = vmax.f32 %v95, 0.0
  %v318 = vmax.f32 %v96, 0.0
  %v319 = vmax.f32 %v97, 0.0
  %v320 = vmax.f32 %v98, 0.0
  %v321 = vmax.f32 %v99, 0.0
  %v322 = vmax.f32 %v100, 0.0
  %v323 = vmax.f32 %v101, 0.0
  %v324 = vmax.f32 %v102, 0.0
  %v325 = vmax.f32 %v103, 0.0
  %v326 = vmax.f32 %v104, 0.0
  %v327 = vmax.f32 %v105, 0.0
  %v328 = vmax.f32 %v106, 0.0
  %v329 = vmax.f32 %v107, 0.0
  %v330 = vmax.f32 %v108, 0.0
  %v331 = vmax.f32 %v109, 0.0
  %v332 = vmax.f32 %v110, 0.0
  %v333 = vmax.f32 %v111, 0.0
  %v334 = vmax.f32 %v112, 0.0
  %v335 = vmax.f32 %v113, 0.0
  %v336 = vmax.f32 %v114, 0.0
  %v337 = vmax.f32 %v115, 0.0
  %v338 = vmax.f32 %v116, 0.0
  %v339 = vmax.f32 %v117, 0.0
  %v340 = vmax.f32 %v118, 0.0
  %v341 = vmax.f32 %v119, 0.0
  %v342 = vmax.f32 %v120, 0.0
  %v343 = vmax.f32 %v121, 0.0
  %v344 = vmax.f32 %v122, 0.0
  %v345 = vmax.f32 %v123, 0.0
  %v346 = vmax.f32 %v124, 0.0
  %v347 = vmax.f32 %v125, 0.0
  %v348 = vmax.f32 %v126, 0.0
  %v349 = vmax.f32 %v127, 0.0
  %v350 = vmax.f32 %v128, 0.0
  %v351 = vmax.f32 %v129, 0.0
  %v352 = vmax.f32 %v130, 0.0
  %v353 = vmax.f32 %v131, 0.0
  %v354 = vmax.f32 %v132, 0.0
  %v355 = vmax.f32 %v133, 0.0
  %v356 = vmax.f32 %v134, 0.0
  %v357 = vmax.f32 %v135, 0.0
  %v358 = vmax.f32 %v136, 0.0
  %v359 = vmax.f32 %v137, 0.0
  %v360 = vmax.f32 %v138, 0.0
  %v361 = vmax.f32 %v139, 0.0
  %v362 = vmax.f32 %v140, 0.0
  %v363 = vmax.f32 %v141, 0.0
  %v364 = vmax.f32 %v142, 0.0
  %v365 = vmax.f32 %v143, 0.0
  %v366 = vmax.f32 %v144, 0.0
  %v367 = vmax.f32 %v145, 0.0
  %v368 = vmax.f32 %v146, 0.0
  %v369 = vmax.f32 %v147, 0.0
  %v370 = vmax.f32 %v148, 0.0
  %v371 = vmax.f32 %v149, 0.0
  %v372 = vmax.f32 %v150, 0.0
  %v373 = vmax.f32 %v151, 0.0
  %v374 = vmax.f32 %v152, 0.0
  %v375 = vmax.f32 %v153, 0.0
  %v376 = vmax.f32 %v154, 0.0
  %v377 = vmax.f32 %v155, 0.0
  %v378 = vmax.f32 %v156, 0.0
  %v379 = vmax.f32 %v157, 0.0
  %v380 = vmax.f32 %v158, 0.0
  %v381 = vmax.f32 %v159, 0.0
  %v382 = vmax.f32 %v160, 0.0
  %v383 = vmax.f32 %v161, 0.0
  %v384 = vmax.f32 %v162, 0.0
  %v385 = vmax.f32 %v163, 0.0
  %v386 = vmax.f32 %v164, 0.0
  %v387 = vmax.f32 %v165, 0.0
  %v388 = vmax.f32 %v166, 0.0
  %v389 = vmax.f32 %v167, 0.0
  %v390 = vmax.f32 %v168, 0.0
  %v391 = vmax.f32 %v169, 0.0
  %v392 = vmax.f32 %v170, 0.0
  %v393 = vmax.f32 %v171, 0.0
  %v394 = vmax.f32 %v172, 0.0
  %v395 = vmax.f32 %v173, 0.0
  %v396 = vmax.f32 %v174, 0.0
  %v397 = vmax.f32 %v175, 0.0
  %v398 = vmax.f32 %v176, 0.0
  %v399 = vmax.f32 %v177, 0.0
  %v400 = vmax.f32 %v178, 0.0
  %v401 = vmax.f32 %v179, 0.0
  %v402 = vmax.f32 %v180, 0.0
  %v403 = vmax.f32 %v181, 0.0
  %v404 = vmax.f32 %v182, 0.0
  %v405 = vmax.f32 %v183, 0.0
  %v406 = vmax.f32 %v184, 0.0
  %v407 = vmax.f32 %v185, 0.0
  %v408 = vmax.f32 %v186, 0.0
  %v409 = vmax.f32 %v187, 0.0
  %v410 = vmax.f32 %v188, 0.0
  %v411 = vmax.f32 %v189, 0.0
  %v412 = vmax.f32 %v190, 0.0
  %v413 = vmax.f32 %v191, 0.0
  %v414 = vmax.f32 %v192, 0.0
  %v415 = vmax.f32 %v193, 0.0
  %v416 = vmax.f32 %v194, 0.0
  %v417 = vmax.f32 %v195, 0.0
  %v418 = vmax.f32 %v196, 0.0
  %v419 = vmax.f32 %v197, 0.0
  %v420 = vmax.f32 %v198, 0.0
  %v421 = vmax.f32 %v199, 0.0
  %v422 = vmax.f32 %v200, 0.0
  %v423 = vmax.f32 %v201, 0.0
  %v424 = vmax.f32 %v202, 0.0
  %v425 = vmax.f32 %v203, 0.0
  %v426 = vmax.f32 %v204, 0.0
  %v427 = vmax.f32 %v205, 0.0
  %v428 = vmax.f32 %v206, 0.0
  %v429 = vmax.f32 %v207, 0.0
  %v430 = vmax.f32 %v208, 0.0
  %v431 = vmax.f32 %v209, 0.0
  %v432 = vmax.f32 %v210, 0.0
  %v433 = vmax.f32 %v211, 0.0
  %v434 = vmax.f32 %v212, 0.0
  %v435 = vmax.f32 %v213, 0.0
  %v436 = vmax.f32 %v214, 0.0
  %v437 = vmax.f32 %v215, 0.0
  %v438 = vmax.f32 %v216, 0.0
  %v439 = vmax.f32 %v217, 0.0
  %v440 = vmax.f32 %v218, 0.0
  %v441 = vmax.f32 %v219, 0.0
  %v442 = vmax.f32 %v220, 0.0
  %v443 = vmax.f32 %v221, 0.0
  %v444 = vmax.f32 %v222, 0.0
  %v445 = vmax.f32 %v223, 0.0
  %v446 = vmax.f32 %v224, 0.0
  %v447 = vmax.f32 %v225, 0.0
  %v448 = vmax.f32 %v226, 0.0
  %v449 = vmax.f32 %v227, 0.0
  %v450 = vmax.f32 %v228, 0.0
  %v451 = vmax.f32 %v229, 0.0
  %452 = vst [vmem:[%s1] sm:$0xff] %v230
  %vm453 = vcmask 556032
  %454 = vst.msk [vmem:[%s1 + $0x8] sm:$0xff] %vm453, %v231
  %455 = vst [vmem:[%s1 + $0x10] sm:$0xff] %v232
  %456 = vst.msk [vmem:[%s1 + $0x18] sm:$0xff] %vm453, %v233
  %457 = vst [vmem:[%s1 + $0x20] sm:$0xff] %v234
  %458 = vst.msk [vmem:[%s1 + $0x28] sm:$0xff] %vm453, %v235
  %459 = vst [vmem:[%s1 + $0x30] sm:$0xff] %v236
  %460 = vst.msk [vmem:[%s1 + $0x38] sm:$0xff] %vm453, %v237
  %461 = vst [vmem:[%s1 + $0x40] sm:$0xff] %v238
  %462 = vst.msk [vmem:[%s1 + $0x48] sm:$0xff] %vm453, %v239
  %463 = vst [vmem:[%s1 + $0x50] sm:$0xff] %v240
  %464 = vst.msk [vmem:[%s1 + $0x58] sm:$0xff] %vm453, %v241
  %465 = vst [vmem:[%s1 + $0x60] sm:$0xff] %v242
  %466 = vst.msk [vmem:[%s1 + $0x68] sm:$0xff] %vm453, %v243
  %467 = vst [vmem:[%s1 + $0x70] sm:$0xff] %v244
  %468 = vst.msk [vmem:[%s1 + $0x78] sm:$0xff] %vm453, %v245
  %469 = vst [vmem:[%s1 + $0x80] sm:$0xff] %v246
  %470 = vst.msk [vmem:[%s1 + $0x88] sm:$0xff] %vm453, %v247
  %471 = vst [vmem:[%s1 + $0x90] sm:$0xff] %v248
  %472 = vst.msk [vmem:[%s1 + $0x98] sm:$0xff] %vm453, %v249
  %473 = vst [vmem:[%s1 + $0xa0] sm:$0xff] %v250
  %474 = vst.msk [vmem:[%s1 + $0xa8] sm:$0xff] %vm453, %v251
  %475 = vst [vmem:[%s1 + $0xb0] sm:$0xff] %v252
  %476 = vst.msk [vmem:[%s1 + $0xb8] sm:$0xff] %vm453, %v253
  %477 = vst [vmem:[%s1 + $0xc0] sm:$0xff] %v254
  %478 = vst.msk [vmem:[%s1 + $0xc8] sm:$0xff] %vm453, %v255
  %479 = vst [vmem:[%s1 + $0xd0] sm:$0xff] %v256
  %480 = vst.msk [vmem:[%s1 + $0xd8] sm:$0xff] %vm453, %v257
  %481 = vst [vmem:[%s1 + $0xe0] sm:$0xff] %v258
  %482 = vst.msk [vmem:[%s1 + $0xe8] sm:$0xff] %vm453, %v259
  %483 = vst [vmem:[%s1 + $0xf0] sm:$0xff] %v260
  %484 = vst.msk [vmem:[%s1 + $0xf8] sm:$0xff] %vm453, %v261
  %485 = vst [vmem:[%s1 + $0x100] sm:$0xff] %v262
  %486 = vst.msk [vmem:[%s1 + $0x108] sm:$0xff] %vm453, %v263
  %487 = vst [vmem:[%s1 + $0x110] sm:$0xff] %v264
  %488 = vst.msk [vmem:[%s1 + $0x118] sm:$0xff] %vm453, %v265
  %489 = vst [vmem:[%s1 + $0x120] sm:$0xff] %v266
  %490 = vst.msk [vmem:[%s1 + $0x128] sm:$0xff] %vm453, %v267
  %491 = vst [vmem:[%s1 + $0x130] sm:$0xff] %v268
  %492 = vst.msk [vmem:[%s1 + $0x138] sm:$0xff] %vm453, %v269
  %493 = vst [vmem:[%s1 + $0x140] sm:$0xff] %v270
  %494 = vst.msk [vmem:[%s1 + $0x148] sm:$0xff] %vm453, %v271
  %495 = vst [vmem:[%s1 + $0x150] sm:$0xff] %v272
  %496 = vst.msk [vmem:[%s1 + $0x158] sm:$0xff] %vm453, %v273
  %497 = vst [vmem:[%s1 + $0x160] sm:$0xff] %v274
  %498 = vst.msk [vmem:[%s1 + $0x168] sm:$0xff] %vm453, %v275
  %499 = vst [vmem:[%s1 + $0x170] sm:$0xff] %v276
  %500 = vst.msk [vmem:[%s1 + $0x178] sm:$0xff] %vm453, %v277
  %501 = vst [vmem:[%s1 + $0x180] sm:$0xff] %v278
  %502 = vst.msk [vmem:[%s1 + $0x188] sm:$0xff] %vm453, %v279
  %503 = vst [vmem:[%s1 + $0x190] sm:$0xff] %v280
  %504 = vst.msk [vmem:[%s1 + $0x198] sm:$0xff] %vm453, %v281
  %505 = vst [vmem:[%s1 + $0x1a0] sm:$0xff] %v282
  %506 = vst.msk [vmem:[%s1 + $0x1a8] sm:$0xff] %vm453, %v283
  %507 = vst [vmem:[%s1 + $0x1b0] sm:$0xff] %v284
  %508 = vst.msk [vmem:[%s1 + $0x1b8] sm:$0xff] %vm453, %v285
  %509 = vst [vmem:[%s1 + $0x1c0] sm:$0xff] %v286
  %510 = vst.msk [vmem:[%s1 + $0x1c8] sm:$0xff] %vm453, %v287
  %511 = vst [vmem:[%s1 + $0x1d0] sm:$0xff] %v288
  %512 = vst.msk [vmem:[%s1 + $0x1d8] sm:$0xff] %vm453, %v289
  %513 = vst [vmem:[%s1 + $0x1e0] sm:$0xff] %v290
  %514 = vst.msk [vmem:[%s1 + $0x1e8] sm:$0xff] %vm453, %v291
  %515 = vst [vmem:[%s1 + $0x1f0] sm:$0xff] %v292
  %516 = vst.msk [vmem:[%s1 + $0x1f8] sm:$0xff] %vm453, %v293
  %517 = vst [vmem:[%s1 + $0x200] sm:$0xff] %v294
  %518 = vst.msk [vmem:[%s1 + $0x208] sm:$0xff] %vm453, %v295
  %519 = vst [vmem:[%s1 + $0x210] sm:$0xff] %v296
  %520 = vst.msk [vmem:[%s1 + $0x218] sm:$0xff] %vm453, %v297
  %521 = vst [vmem:[%s1 + $0x220] sm:$0xff] %v298
  %522 = vst.msk [vmem:[%s1 + $0x228] sm:$0xff] %vm453, %v299
  %523 = vst [vmem:[%s1 + $0x230] sm:$0xff] %v300
  %524 = vst.msk [vmem:[%s1 + $0x238] sm:$0xff] %vm453, %v301
  %525 = vst [vmem:[%s1 + $0x240] sm:$0xff] %v302
  %526 = vst.msk [vmem:[%s1 + $0x248] sm:$0xff] %vm453, %v303
  %527 = vst [vmem:[%s1 + $0x250] sm:$0xff] %v304
  %528 = vst.msk [vmem:[%s1 + $0x258] sm:$0xff] %vm453, %v305
  %529 = vst [vmem:[%s1 + $0x260] sm:$0xff] %v306
  %530 = vst.msk [vmem:[%s1 + $0x268] sm:$0xff] %vm453, %v307
  %531 = vst [vmem:[%s1 + $0x270] sm:$0xff] %v308
  %532 = vst.msk [vmem:[%s1 + $0x278] sm:$0xff] %vm453, %v309
  %533 = vst [vmem:[%s1 + $0x280] sm:$0xff] %v310
  %534 = vst.msk [vmem:[%s1 + $0x288] sm:$0xff] %vm453, %v311
  %535 = vst [vmem:[%s1 + $0x290] sm:$0xff] %v312
  %536 = vst.msk [vmem:[%s1 + $0x298] sm:$0xff] %vm453, %v313
  %537 = vst [vmem:[%s1 + $0x2a0] sm:$0xff] %v314
  %538 = vst.msk [vmem:[%s1 + $0x2a8] sm:$0xff] %vm453, %v315
  %539 = vst [vmem:[%s1 + $0x2b0] sm:$0xff] %v316
  %540 = vst.msk [vmem:[%s1 + $0x2b8] sm:$0xff] %vm453, %v317
  %541 = vst [vmem:[%s1 + $0x2c0] sm:$0xff] %v318
  %542 = vst.msk [vmem:[%s1 + $0x2c8] sm:$0xff] %vm453, %v319
  %543 = vst [vmem:[%s1 + $0x2d0] sm:$0xff] %v320
  %544 = vst.msk [vmem:[%s1 + $0x2d8] sm:$0xff] %vm453, %v321
  %545 = vst [vmem:[%s1 + $0x2e0] sm:$0xff] %v322
  %546 = vst.msk [vmem:[%s1 + $0x2e8] sm:$0xff] %vm453, %v323
  %547 = vst [vmem:[%s1 + $0x2f0] sm:$0xff] %v324
  %548 = vst.msk [vmem:[%s1 + $0x2f8] sm:$0xff] %vm453, %v325
  %549 = vst [vmem:[%s1 + $0x300] sm:$0xff] %v326
  %550 = vst.msk [vmem:[%s1 + $0x308] sm:$0xff] %vm453, %v327
  %551 = vst [vmem:[%s1 + $0x310] sm:$0xff] %v328
  %552 = vst.msk [vmem:[%s1 + $0x318] sm:$0xff] %vm453, %v329
  %553 = vst [vmem:[%s1 + $0x320] sm:$0xff] %v330
  %554 = vst.msk [vmem:[%s1 + $0x328] sm:$0xff] %vm453, %v331
  %555 = vst [vmem:[%s1 + $0x330] sm:$0xff] %v332
  %556 = vst.msk [vmem:[%s1 + $0x338] sm:$0xff] %vm453, %v333
  %557 = vst [vmem:[%s1 + $0x340] sm:$0xff] %v334
  %558 = vst.msk [vmem:[%s1 + $0x348] sm:$0xff] %vm453, %v335
  %559 = vst [vmem:[%s1 + $0x350] sm:$0xff] %v336
  %560 = vst.msk [vmem:[%s1 + $0x358] sm:$0xff] %vm453, %v337
  %561 = vst [vmem:[%s1 + $0x360] sm:$0xff] %v338
  %562 = vst.msk [vmem:[%s1 + $0x368] sm:$0xff] %vm453, %v339
  %563 = vst [vmem:[%s1 + $0x370] sm:$0xff] %v340
  %564 = vst.msk [vmem:[%s1 + $0x378] sm:$0xff] %vm453, %v341
  %565 = vst [vmem:[%s1 + $0x380] sm:$0xff] %v342
  %566 = vst.msk [vmem:[%s1 + $0x388] sm:$0xff] %vm453, %v343
  %567 = vst [vmem:[%s1 + $0x390] sm:$0xff] %v344
  %568 = vst.msk [vmem:[%s1 + $0x398] sm:$0xff] %vm453, %v345
  %569 = vst [vmem:[%s1 + $0x3a0] sm:$0xff] %v346
  %570 = vst.msk [vmem:[%s1 + $0x3a8] sm:$0xff] %vm453, %v347
  %571 = vst [vmem:[%s1 + $0x3b0] sm:$0xff] %v348
  %572 = vst.msk [vmem:[%s1 + $0x3b8] sm:$0xff] %vm453, %v349
  %573 = vst [vmem:[%s1 + $0x3c0] sm:$0xff] %v350
  %574 = vst.msk [vmem:[%s1 + $0x3c8] sm:$0xff] %vm453, %v351
  %575 = vst [vmem:[%s1 + $0x3d0] sm:$0xff] %v352
  %576 = vst.msk [vmem:[%s1 + $0x3d8] sm:$0xff] %vm453, %v353
  %577 = vst [vmem:[%s1 + $0x3e0] sm:$0xff] %v354
  %578 = vst.msk [vmem:[%s1 + $0x3e8] sm:$0xff] %vm453, %v355
  %579 = vst [vmem:[%s1 + $0x3f0] sm:$0xff] %v356
  %580 = vst.msk [vmem:[%s1 + $0x3f8] sm:$0xff] %vm453, %v357
  %581 = vst [vmem:[%s1 + $0x400] sm:$0xff] %v358
  %582 = vst.msk [vmem:[%s1 + $0x408] sm:$0xff] %vm453, %v359
  %583 = vst [vmem:[%s1 + $0x410] sm:$0xff] %v360
  %584 = vst.msk [vmem:[%s1 + $0x418] sm:$0xff] %vm453, %v361
  %585 = vst [vmem:[%s1 + $0x420] sm:$0xff] %v362
  %586 = vst.msk [vmem:[%s1 + $0x428] sm:$0xff] %vm453, %v363
  %587 = vst [vmem:[%s1 + $0x430] sm:$0xff] %v364
  %588 = vst.msk [vmem:[%s1 + $0x438] sm:$0xff] %vm453, %v365
  %589 = vst [vmem:[%s1 + $0x440] sm:$0xff] %v366
  %590 = vst.msk [vmem:[%s1 + $0x448] sm:$0xff] %vm453, %v367
  %591 = vst [vmem:[%s1 + $0x450] sm:$0xff] %v368
  %592 = vst.msk [vmem:[%s1 + $0x458] sm:$0xff] %vm453, %v369
  %593 = vst [vmem:[%s1 + $0x460] sm:$0xff] %v370
  %594 = vst.msk [vmem:[%s1 + $0x468] sm:$0xff] %vm453, %v371
  %595 = vst [vmem:[%s1 + $0x470] sm:$0xff] %v372
  %596 = vst.msk [vmem:[%s1 + $0x478] sm:$0xff] %vm453, %v373
  %597 = vst [vmem:[%s1 + $0x480] sm:$0xff] %v374
  %598 = vst.msk [vmem:[%s1 + $0x488] sm:$0xff] %vm453, %v375
  %599 = vst [vmem:[%s1 + $0x490] sm:$0xff] %v376
  %600 = vst.msk [vmem:[%s1 + $0x498] sm:$0xff] %vm453, %v377
  %601 = vst [vmem:[%s1 + $0x4a0] sm:$0xff] %v378
  %602 = vst.msk [vmem:[%s1 + $0x4a8] sm:$0xff] %vm453, %v379
  %603 = vst [vmem:[%s1 + $0x4b0] sm:$0xff] %v380
  %604 = vst.msk [vmem:[%s1 + $0x4b8] sm:$0xff] %vm453, %v381
  %605 = vst [vmem:[%s1 + $0x4c0] sm:$0xff] %v382
  %606 = vst.msk [vmem:[%s1 + $0x4c8] sm:$0xff] %vm453, %v383
  %607 = vst [vmem:[%s1 + $0x4d0] sm:$0xff] %v384
  %608 = vst.msk [vmem:[%s1 + $0x4d8] sm:$0xff] %vm453, %v385
  %609 = vst [vmem:[%s1 + $0x4e0] sm:$0xff] %v386
  %610 = vst.msk [vmem:[%s1 + $0x4e8] sm:$0xff] %vm453, %v387
  %611 = vst [vmem:[%s1 + $0x4f0] sm:$0xff] %v388
  %612 = vst.msk [vmem:[%s1 + $0x4f8] sm:$0xff] %vm453, %v389
  %613 = vst [vmem:[%s1 + $0x500] sm:$0xff] %v390
  %614 = vst.msk [vmem:[%s1 + $0x508] sm:$0xff] %vm453, %v391
  %615 = vst [vmem:[%s1 + $0x510] sm:$0xff] %v392
  %616 = vst.msk [vmem:[%s1 + $0x518] sm:$0xff] %vm453, %v393
  %617 = vst [vmem:[%s1 + $0x520] sm:$0xff] %v394
  %618 = vst.msk [vmem:[%s1 + $0x528] sm:$0xff] %vm453, %v395
  %619 = vst [vmem:[%s1 + $0x530] sm:$0xff] %v396
  %620 = vst.msk [vmem:[%s1 + $0x538] sm:$0xff] %vm453, %v397
  %621 = vst [vmem:[%s1 + $0x540] sm:$0xff] %v398
  %622 = vst.msk [vmem:[%s1 + $0x548] sm:$0xff] %vm453, %v399
  %623 = vst [vmem:[%s1 + $0x550] sm:$0xff] %v400
  %624 = vst.msk [vmem:[%s1 + $0x558] sm:$0xff] %vm453, %v401
  %625 = vst [vmem:[%s1 + $0x560] sm:$0xff] %v402
  %626 = vst.msk [vmem:[%s1 + $0x568] sm:$0xff] %vm453, %v403
  %627 = vst [vmem:[%s1 + $0x570] sm:$0xff] %v404
  %628 = vst.msk [vmem:[%s1 + $0x578] sm:$0xff] %vm453, %v405
  %629 = vst [vmem:[%s1 + $0x580] sm:$0xff] %v406
  %630 = vst.msk [vmem:[%s1 + $0x588] sm:$0xff] %vm453, %v407
  %631 = vst [vmem:[%s1 + $0x590] sm:$0xff] %v408
  %632 = vst.msk [vmem:[%s1 + $0x598] sm:$0xff] %vm453, %v409
  %633 = vst [vmem:[%s1 + $0x5a0] sm:$0xff] %v410
  %634 = vst.msk [vmem:[%s1 + $0x5a8] sm:$0xff] %vm453, %v411
  %635 = vst [vmem:[%s1 + $0x5b0] sm:$0xff] %v412
  %636 = vst.msk [vmem:[%s1 + $0x5b8] sm:$0xff] %vm453, %v413
  %637 = vst [vmem:[%s1 + $0x5c0] sm:$0xff] %v414
  %638 = vst.msk [vmem:[%s1 + $0x5c8] sm:$0xff] %vm453, %v415
  %639 = vst [vmem:[%s1 + $0x5d0] sm:$0xff] %v416
  %640 = vst.msk [vmem:[%s1 + $0x5d8] sm:$0xff] %vm453, %v417
  %641 = vst [vmem:[%s1 + $0x5e0] sm:$0xff] %v418
  %642 = vst.msk [vmem:[%s1 + $0x5e8] sm:$0xff] %vm453, %v419
  %643 = vst [vmem:[%s1 + $0x5f0] sm:$0xff] %v420
  %644 = vst.msk [vmem:[%s1 + $0x5f8] sm:$0xff] %vm453, %v421
  %645 = vst [vmem:[%s1 + $0x600] sm:$0xff] %v422
  %646 = vst.msk [vmem:[%s1 + $0x608] sm:$0xff] %vm453, %v423
  %647 = vst [vmem:[%s1 + $0x610] sm:$0xff] %v424
  %648 = vst.msk [vmem:[%s1 + $0x618] sm:$0xff] %vm453, %v425
  %649 = vst [vmem:[%s1 + $0x620] sm:$0xff] %v426
  %650 = vst.msk [vmem:[%s1 + $0x628] sm:$0xff] %vm453, %v427
  %651 = vst [vmem:[%s1 + $0x630] sm:$0xff] %v428
  %652 = vst.msk [vmem:[%s1 + $0x638] sm:$0xff] %vm453, %v429
  %653 = vst [vmem:[%s1 + $0x640] sm:$0xff] %v430
  %654 = vst.msk [vmem:[%s1 + $0x648] sm:$0xff] %vm453, %v431
  %655 = vst [vmem:[%s1 + $0x650] sm:$0xff] %v432
  %656 = vst.msk [vmem:[%s1 + $0x658] sm:$0xff] %vm453, %v433
  %657 = vst [vmem:[%s1 + $0x660] sm:$0xff] %v434
  %658 = vst.msk [vmem:[%s1 + $0x668] sm:$0xff] %vm453, %v435
  %659 = vst [vmem:[%s1 + $0x670] sm:$0xff] %v436
  %660 = vst.msk [vmem:[%s1 + $0x678] sm:$0xff] %vm453, %v437
  %661 = vst [vmem:[%s1 + $0x680] sm:$0xff] %v438
  %662 = vst.msk [vmem:[%s1 + $0x688] sm:$0xff] %vm453, %v439
  %663 = vst [vmem:[%s1 + $0x690] sm:$0xff] %v440
  %664 = vst.msk [vmem:[%s1 + $0x698] sm:$0xff] %vm453, %v441
  %665 = vst [vmem:[%s1 + $0x6a0] sm:$0xff] %v442
  %666 = vst.msk [vmem:[%s1 + $0x6a8] sm:$0xff] %vm453, %v443
  %667 = vst [vmem:[%s1 + $0x6b0] sm:$0xff] %v444
  %668 = vst.msk [vmem:[%s1 + $0x6b8] sm:$0xff] %vm453, %v445
  %669 = vst [vmem:[%s1 + $0x6c0] sm:$0xff] %v446
  %670 = vst.msk [vmem:[%s1 + $0x6c8] sm:$0xff] %vm453, %v447
  %671 = vst [vmem:[%s1 + $0x6d0] sm:$0xff] %v448
  %672 = vst.msk [vmem:[%s1 + $0x6d8] sm:$0xff] %vm453, %v449
  %673 = vst [vmem:[%s1 + $0x6e0] sm:$0xff] %v450
  %674 = vst.msk [vmem:[%s1 + $0x6e8] sm:$0xff] %vm453, %v451
  // Predicated region
  $region6: #{tpu_custom_call.1} parent=0 // pred_check
    _
  $region7: #{tpu_custom_call.1} parent=0 // pred_check_branch
    %676 = sbr.rel (0) target = $region9
  $region8: #{tpu_custom_call.1} parent=0 // pred_region
    _
  $region9: #{tpu_custom_call.1} parent=0 // pred_fallthru
    _
  // Predicated region
  $region10: #{tpu_custom_call.1} parent=0 // pred_check
    _
  $region11: #{tpu_custom_call.1} parent=0 // pred_check_branch
    %678 = sbr.rel (0) target = $region13
  $region12: #{tpu_custom_call.1} parent=0 // pred_region
    _
  $region13: #{tpu_custom_call.1} parent=0 // pred_fallthru
    _

</llo_original>
